<compile_context>
chip_gen: v6e
topology: v6e:2x2x1
jax: 0.10.0
libtpu: 0.0.40
codegen_flags: <defaults>
</compile_context>

<pallas_src>
import functools

import jax
import jax.numpy as jnp
from jax.experimental import pallas as pl
from jax.experimental.pallas import tpu as pltpu

# Deterministic RK coefficients from RK4CrankNicolsonStepper.__init__ (low_storage=True).
LOW_STORAGE_WEIGHTS = {
    "alphas": [0.0, 0.1496590219993, 0.3704009573644, 0.6222557631345,
               0.9582821306748, 1.0],
    "betas": [0.0, -0.4178904745, -1.192151694643, -1.697784692471,
              -1.514183444257],
    "gammas": [0.1496590219993, 0.3792103129999, 0.8229550293869,
               0.6994504559488, 0.1530572479681],
}

NONLINEAR_COEFF = 0.1  # coefficient of the synthetic explicit term F(u) = c*u - u^3

VMEM_BUDGET_BYTES = 24 << 20  # conservative: fits v7x (64 MiB phys / 32 MiB scoped)


def _rk4_cn_kernel(u_ref, a_ref, b_ref, o_ref, *, betas, nl_coeff):
    """Fused low-storage RK4/CN stages for one (batch-tile, spatial-tile) block.

    With precomputed operators A_k = (1+mu_k*L)/(1-mu_k*L), B_k = gamma_k*dt/(1-mu_k*L):
        h = F(u) + beta_k*h
        u = A_k*u + B_k*h
    which is algebraically identical to
        u = (u + gamma_k*dt*h + mu_k*L*u) / (1 - mu_k*L)
    """
    u = u_ref[...].astype(jnp.float32)            # (TB, TR, lane)
    h = jnp.zeros_like(u)
    for k in range(len(betas)):                   # static unrolled 5-stage loop
        fu = u * (nl_coeff - u * u)               # explicit terms F(u) = c*u - u^3
        h = fu if betas[k] == 0.0 else fu + betas[k] * h
        ak = a_ref[k].astype(jnp.float32)         # (TR, lane), broadcast over TB
        bk = b_ref[k].astype(jnp.float32)
        u = ak * u + bk * h
    o_ref[...] = u.astype(o_ref.dtype)


def _choose_layout(m):
    """Pick (padded_elems, rows, lane) lane-dense 2D view of one batch element."""
    # Prefer an unpadded factorization with rows % 8 == 0 (full sublane packing).
    for lane in (512, 256, 128):
        if m % lane == 0 and (m // lane) % 8 == 0:
            return m, m // lane, lane
    # Unpadded but awkward row count: legal (full-dim block), sublane-partial only.
    if m % 128 == 0:
        return m, m // 128, 128
    # Pad to a multiple of 8*128 so both sublane and lane dims are fully aligned.
    m_pad = -(-m // 1024) * 1024
    return m_pad, m_pad // 128, 128


def _choose_row_tile(rows, lane, slab_bytes):
    """Largest row tile: multiple-of-8 divisor of rows whose f32 slab fits budget."""
    if rows % 8 != 0:
        return rows                    # full-dim block (legal); only for small m
    best = 8
    for tr in range(8, rows + 1, 8):
        if rows % tr == 0 and tr * lane * 4 <= slab_bytes:
            best = tr
    return best


def _largest_divisor_leq(n, cap):
    return max(d for d in range(1, min(n, cap) + 1) if n % d == 0)


def rk4_crank_nicolson_step(u, linear_op, dt, params=None):
    """Pallas equivalent of RK4CrankNicolsonStepper.forward(u, dt, equation).

    Args:
      u:         (B, n, n) state  w^{t_i}
      linear_op: (n, n) diagonal implicit operator L (defines equation.implicit_terms)
      dt:        time step (static Python float)
      params:    optional dict overriding {'alphas','betas','gammas'}
    Returns:
      (B, n, n) state  w^{t_{i+1}}
    """
    params = LOW_STORAGE_WEIGHTS if params is None else params
    alphas = tuple(float(a) for a in params["alphas"])
    betas = tuple(float(b) for b in params["betas"])
    gammas = tuple(float(g) for g in params["gammas"])
    if len(alphas) - 1 != len(betas) or len(betas) != len(gammas):
        raise ValueError("number of RK coefficients does not match")
    n_stages = len(betas)
    dt = float(dt)

    B, n, n2 = u.shape
    assert n == n2, "expected square spatial grid (B, n, n)"
    M = n * n

    m_pad, rows, lane = _choose_layout(M)

    # Batch tile: divisor of B up to 8 (amortizes per-grid-step overhead).
    tb = _largest_divisor_leq(B, 8)

    # Row tile sized so the whole double-buffered working set fits the VMEM budget:
    #   2*(in u) + 2*(out u) + 2*A + 2*B  =  4*(TB + S) slabs,  slab = TR*lane*4 bytes.
    slab_max = max(VMEM_BUDGET_BYTES // (4 * (tb + n_stages)), 8 * lane * 4)
    tr = _choose_row_tile(rows, lane, slab_max)
    grid_m = rows // tr
    b_tiles = B // tb

    # v7x has 2 TensorCores: make sure the parallel grid has >= 2 programs if possible.
    if grid_m * b_tiles < 2:
        if B >= 2:
            tb = max(d for d in range(1, B) if B % d == 0)   # largest divisor < B
            b_tiles = B // tb
        elif rows % 8 == 0 and rows >= 16:
            for cand in range(tr - 8, 7, -8):
                if rows % cand == 0:
                    tr = cand
                    break
            grid_m = rows // tr

    # Flatten each batch element to a lane-dense (rows, lane) view (pad if needed).
    u_flat = u.reshape(B, M)
    l_flat = linear_op.astype(jnp.float32).reshape(M)
    if m_pad != M:
        u_flat = jnp.pad(u_flat, ((0, 0), (0, m_pad - M)))
        l_flat = jnp.pad(l_flat, (0, m_pad - M))   # L=0 on pad -> A=1, B=g*dt, u stays 0
    u3 = u_flat.reshape(B, rows, lane)
    l3 = l_flat.reshape(rows, lane)

    # Precomputed per-stage operators (stacked (S, rows, lane)).
    mus = jnp.asarray(
        [0.5 * dt * (alphas[k + 1] - alphas[k]) for k in range(n_stages)],
        jnp.float32).reshape(n_stages, 1, 1)
    gdt = jnp.asarray([g * dt for g in gammas], jnp.float32).reshape(n_stages, 1, 1)
    denom = 1.0 - mus * l3[None]
    a_ops = (1.0 + mus * l3[None]) / denom          # A_k = (1+mu_k*L)/(1-mu_k*L)
    b_ops = gdt / denom                             # B_k = gamma_k*dt/(1-mu_k*L)

    kernel = functools.partial(
        _rk4_cn_kernel, betas=betas, nl_coeff=float(NONLINEAR_COEFF))

    # Real double-buffered VMEM footprint + headroom (no blind clamping).
    slab = tr * lane * 4
    footprint = 4 * (tb + n_stages) * slab
    vmem_limit = int(min(max(footprint + (8 << 20), 16 << 20), 40 << 20))

    cost = pl.CostEstimate(
        flops=8 * n_stages * B * m_pad,
        transcendentals=0,
        # u in + u out per batch element; A/B stacks fetched once per spatial tile.
        bytes_accessed=4 * (2 * B * m_pad + 2 * n_stages * m_pad),
    )

    out = pl.pallas_call(
        kernel,
        out_shape=jax.ShapeDtypeStruct((B, rows, lane), u.dtype),
        grid=(grid_m, b_tiles),   # spatial outer, batch inner -> operator blocks resident
        in_specs=[
            pl.BlockSpec((tb, tr, lane), lambda m, b: (b, m, 0)),          # u block
            pl.BlockSpec((n_stages, tr, lane), lambda m, b: (0, m, 0)),    # A_k stack
            pl.BlockSpec((n_stages, tr, lane), lambda m, b: (0, m, 0)),    # B_k stack
        ],
        out_specs=pl.BlockSpec((tb, tr, lane), lambda m, b: (b, m, 0)),
        cost_estimate=cost,
        compiler_params=pltpu.CompilerParams(
            dimension_semantics=("parallel", "parallel"),
            vmem_limit_bytes=vmem_limit),
    )(u3, a_ops, b_ops)

    out = out.reshape(B, m_pad)[:, :M].reshape(B, n, n)
    return out


def _rk4_crank_nicolson_ref(u, linear_op, dt, params=None):
    """Pure-JAX reference (mirrors the PyTorch forward loop exactly)."""
    params = LOW_STORAGE_WEIGHTS if params is None else params
    alphas, betas, gammas = params["alphas"], params["betas"], params["gammas"]
    L = linear_op[None].astype(jnp.float32)
    u = u.astype(jnp.float32)

    def F(v):
        return NONLINEAR_COEFF * v - v ** 3

    def G(v):
        return L * v

    def G_inv(f, mu):
        return f / (1.0 - mu * L)

    h = 0.0
    for k in range(len(betas)):
        h = F(u) + betas[k] * h
        mu = 0.5 * dt * (alphas[k + 1] - alphas[k])
        u = G_inv(u + gammas[k] * dt * h + mu * G(u), mu)
    return u


if __name__ == "__main__":
    key = jax.random.PRNGKey(0)
    B, n = 2, 16
    dt = 0.01

    u0 = jax.random.normal(key, (B, n, n), dtype=jnp.float32)

    # Deterministic diagonal implicit operator: spectral-Laplacian-like eigenvalues,
    # negative semi-definite (diffusion), scaled by a viscosity nu.
    nu = 0.05
    kx = jnp.fft.fftfreq(n, d=1.0 / n).astype(jnp.float32)       # (n,)
    k2 = kx[:, None] ** 2 + kx[None, :] ** 2                     # (n, n)
    linear_op = (-nu * k2).astype(jnp.float32)                   # (n, n)

    ref = _rk4_crank_nicolson_ref(u0, linear_op, dt)
    ref = jax.block_until_ready(ref)

    out = rk4_crank_nicolson_step(u0, linear_op, dt)
    out = jax.block_until_ready(out)

    assert out.shape == (B, n, n) and out.dtype == jnp.float32
    assert jnp.allclose(out, ref, atol=1e-5, rtol=1e-5), "Pallas result mismatch"

    # TODO(synk): the PyTorch module's F/G/G_inv are abstract (equation-dependent);
    # here they are instantiated with a concrete diagonal spectral diffusion equation.
    print("KERNEL_OK")
</pallas_src>

<mosaic_0001>
module attributes {stable_mosaic.version = 11 : i64} {
  func.func @_rk4_cn_kernel(%arg0: i32, %arg1: i32, %arg2: memref<1x2x128xf32, #tpu.memory_space<vmem>>, %arg3: memref<5x2x128xf32, #tpu.memory_space<vmem>>, %arg4: memref<5x2x128xf32, #tpu.memory_space<vmem>>, %arg5: memref<1x2x128xf32, #tpu.memory_space<vmem>>) attributes {dimension_semantics = [#tpu.dimension_semantics<parallel>, #tpu.dimension_semantics<parallel>], iteration_bounds = array<i64: 1, 2>, scalar_prefetch = 0 : i64, scratch_operands = 0 : i64, tpu.core_type = #tpu.core_type<tc>, window_params = [{transform_indices = @transform_0, window_bounds = array<i64: 1, 2, 128>}, {transform_indices = @transform_1, window_bounds = array<i64: 5, 2, 128>}, {transform_indices = @transform_2, window_bounds = array<i64: 5, 2, 128>}, {transform_indices = @transform_3, window_bounds = array<i64: 1, 2, 128>}]} {
    %c0 = arith.constant 0 : index
    %c0_0 = arith.constant 0 : index
    %c0_1 = arith.constant 0 : index
    %0 = vector.load %arg2[%c0, %c0_0, %c0_1] : memref<1x2x128xf32, #tpu.memory_space<vmem>>, vector<1x2x128xf32>
    %1 = arith.mulf %0, %0 : vector<1x2x128xf32>
    %cst = arith.constant 1.000000e-01 : f32
    %2 = vector.broadcast %cst : f32 to vector<1x2x128xf32>
    %3 = arith.subf %2, %1 : vector<1x2x128xf32>
    %4 = arith.mulf %0, %3 : vector<1x2x128xf32>
    %c0_2 = arith.constant 0 : index
    %c0_3 = arith.constant 0 : index
    %c0_4 = arith.constant 0 : index
    %5 = vector.load %arg3[%c0_2, %c0_3, %c0_4] : memref<5x2x128xf32, #tpu.memory_space<vmem>>, vector<1x2x128xf32>
    %6 = vector.shape_cast %5 : vector<1x2x128xf32> to vector<2x128xf32>
    %c0_5 = arith.constant 0 : index
    %c0_6 = arith.constant 0 : index
    %c0_7 = arith.constant 0 : index
    %7 = vector.load %arg4[%c0_5, %c0_6, %c0_7] : memref<5x2x128xf32, #tpu.memory_space<vmem>>, vector<1x2x128xf32>
    %8 = vector.shape_cast %7 : vector<1x2x128xf32> to vector<2x128xf32>
    %9 = vector.shape_cast %6 : vector<2x128xf32> to vector<1x2x128xf32>
    %10 = arith.mulf %9, %0 : vector<1x2x128xf32>
    %11 = vector.shape_cast %8 : vector<2x128xf32> to vector<1x2x128xf32>
    %12 = arith.mulf %11, %4 : vector<1x2x128xf32>
    %13 = arith.addf %10, %12 : vector<1x2x128xf32>
    %14 = arith.mulf %13, %13 : vector<1x2x128xf32>
    %cst_8 = arith.constant 1.000000e-01 : f32
    %15 = vector.broadcast %cst_8 : f32 to vector<1x2x128xf32>
    %16 = arith.subf %15, %14 : vector<1x2x128xf32>
    %17 = arith.mulf %13, %16 : vector<1x2x128xf32>
    %cst_9 = arith.constant -0.417890489 : f32
    %18 = vector.broadcast %cst_9 : f32 to vector<1x2x128xf32>
    %19 = arith.mulf %18, %4 : vector<1x2x128xf32>
    %20 = arith.addf %17, %19 : vector<1x2x128xf32>
    %c1 = arith.constant 1 : index
    %c0_10 = arith.constant 0 : index
    %c0_11 = arith.constant 0 : index
    %21 = vector.load %arg3[%c1, %c0_10, %c0_11] : memref<5x2x128xf32, #tpu.memory_space<vmem>>, vector<1x2x128xf32>
    %22 = vector.shape_cast %21 : vector<1x2x128xf32> to vector<2x128xf32>
    %c1_12 = arith.constant 1 : index
    %c0_13 = arith.constant 0 : index
    %c0_14 = arith.constant 0 : index
    %23 = vector.load %arg4[%c1_12, %c0_13, %c0_14] : memref<5x2x128xf32, #tpu.memory_space<vmem>>, vector<1x2x128xf32>
    %24 = vector.shape_cast %23 : vector<1x2x128xf32> to vector<2x128xf32>
    %25 = vector.shape_cast %22 : vector<2x128xf32> to vector<1x2x128xf32>
    %26 = arith.mulf %25, %13 : vector<1x2x128xf32>
    %27 = vector.shape_cast %24 : vector<2x128xf32> to vector<1x2x128xf32>
    %28 = arith.mulf %27, %20 : vector<1x2x128xf32>
    %29 = arith.addf %26, %28 : vector<1x2x128xf32>
    %30 = arith.mulf %29, %29 : vector<1x2x128xf32>
    %cst_15 = arith.constant 1.000000e-01 : f32
    %31 = vector.broadcast %cst_15 : f32 to vector<1x2x128xf32>
    %32 = arith.subf %31, %30 : vector<1x2x128xf32>
    %33 = arith.mulf %29, %32 : vector<1x2x128xf32>
    %cst_16 = arith.constant -1.19215167 : f32
    %34 = vector.broadcast %cst_16 : f32 to vector<1x2x128xf32>
    %35 = arith.mulf %34, %20 : vector<1x2x128xf32>
    %36 = arith.addf %33, %35 : vector<1x2x128xf32>
    %c2 = arith.constant 2 : index
    %c0_17 = arith.constant 0 : index
    %c0_18 = arith.constant 0 : index
    %37 = vector.load %arg3[%c2, %c0_17, %c0_18] : memref<5x2x128xf32, #tpu.memory_space<vmem>>, vector<1x2x128xf32>
    %38 = vector.shape_cast %37 : vector<1x2x128xf32> to vector<2x128xf32>
    %c2_19 = arith.constant 2 : index
    %c0_20 = arith.constant 0 : index
    %c0_21 = arith.constant 0 : index
    %39 = vector.load %arg4[%c2_19, %c0_20, %c0_21] : memref<5x2x128xf32, #tpu.memory_space<vmem>>, vector<1x2x128xf32>
    %40 = vector.shape_cast %39 : vector<1x2x128xf32> to vector<2x128xf32>
    %41 = vector.shape_cast %38 : vector<2x128xf32> to vector<1x2x128xf32>
    %42 = arith.mulf %41, %29 : vector<1x2x128xf32>
    %43 = vector.shape_cast %40 : vector<2x128xf32> to vector<1x2x128xf32>
    %44 = arith.mulf %43, %36 : vector<1x2x128xf32>
    %45 = arith.addf %42, %44 : vector<1x2x128xf32>
    %46 = arith.mulf %45, %45 : vector<1x2x128xf32>
    %cst_22 = arith.constant 1.000000e-01 : f32
    %47 = vector.broadcast %cst_22 : f32 to vector<1x2x128xf32>
    %48 = arith.subf %47, %46 : vector<1x2x128xf32>
    %49 = arith.mulf %45, %48 : vector<1x2x128xf32>
    %cst_23 = arith.constant -1.69778466 : f32
    %50 = vector.broadcast %cst_23 : f32 to vector<1x2x128xf32>
    %51 = arith.mulf %50, %36 : vector<1x2x128xf32>
    %52 = arith.addf %49, %51 : vector<1x2x128xf32>
    %c3 = arith.constant 3 : index
    %c0_24 = arith.constant 0 : index
    %c0_25 = arith.constant 0 : index
    %53 = vector.load %arg3[%c3, %c0_24, %c0_25] : memref<5x2x128xf32, #tpu.memory_space<vmem>>, vector<1x2x128xf32>
    %54 = vector.shape_cast %53 : vector<1x2x128xf32> to vector<2x128xf32>
    %c3_26 = arith.constant 3 : index
    %c0_27 = arith.constant 0 : index
    %c0_28 = arith.constant 0 : index
    %55 = vector.load %arg4[%c3_26, %c0_27, %c0_28] : memref<5x2x128xf32, #tpu.memory_space<vmem>>, vector<1x2x128xf32>
    %56 = vector.shape_cast %55 : vector<1x2x128xf32> to vector<2x128xf32>
    %57 = vector.shape_cast %54 : vector<2x128xf32> to vector<1x2x128xf32>
    %58 = arith.mulf %57, %45 : vector<1x2x128xf32>
    %59 = vector.shape_cast %56 : vector<2x128xf32> to vector<1x2x128xf32>
    %60 = arith.mulf %59, %52 : vector<1x2x128xf32>
    %61 = arith.addf %58, %60 : vector<1x2x128xf32>
    %62 = arith.mulf %61, %61 : vector<1x2x128xf32>
    %cst_29 = arith.constant 1.000000e-01 : f32
    %63 = vector.broadcast %cst_29 : f32 to vector<1x2x128xf32>
    %64 = arith.subf %63, %62 : vector<1x2x128xf32>
    %65 = arith.mulf %61, %64 : vector<1x2x128xf32>
    %cst_30 = arith.constant -1.5141834 : f32
    %66 = vector.broadcast %cst_30 : f32 to vector<1x2x128xf32>
    %67 = arith.mulf %66, %52 : vector<1x2x128xf32>
    %68 = arith.addf %65, %67 : vector<1x2x128xf32>
    %c4 = arith.constant 4 : index
    %c0_31 = arith.constant 0 : index
    %c0_32 = arith.constant 0 : index
    %69 = vector.load %arg3[%c4, %c0_31, %c0_32] : memref<5x2x128xf32, #tpu.memory_space<vmem>>, vector<1x2x128xf32>
    %70 = vector.shape_cast %69 : vector<1x2x128xf32> to vector<2x128xf32>
    %c4_33 = arith.constant 4 : index
    %c0_34 = arith.constant 0 : index
    %c0_35 = arith.constant 0 : index
    %71 = vector.load %arg4[%c4_33, %c0_34, %c0_35] : memref<5x2x128xf32, #tpu.memory_space<vmem>>, vector<1x2x128xf32>
    %72 = vector.shape_cast %71 : vector<1x2x128xf32> to vector<2x128xf32>
    %73 = vector.shape_cast %70 : vector<2x128xf32> to vector<1x2x128xf32>
    %74 = arith.mulf %73, %61 : vector<1x2x128xf32>
    %75 = vector.shape_cast %72 : vector<2x128xf32> to vector<1x2x128xf32>
    %76 = arith.mulf %75, %68 : vector<1x2x128xf32>
    %77 = arith.addf %74, %76 : vector<1x2x128xf32>
    %c0_36 = arith.constant 0 : index
    %c0_37 = arith.constant 0 : index
    %c0_38 = arith.constant 0 : index
    %78 = vector.load %arg5[%c0_36, %c0_37, %c0_38] : memref<1x2x128xf32, #tpu.memory_space<vmem>>, vector<1x2x128xf32>
    tpu.vector_store %arg5[%c0_36, %c0_37, %c0_38], %77 {strides = array<i32>} : memref<1x2x128xf32, #tpu.memory_space<vmem>>, vector<1x2x128xf32>,
    return
  }
  func.func @transform_0(%arg0: i32, %arg1: i32) -> (i32, i32, i32) {
    %c0_i32 = arith.constant 0 : i32
    %c0_i32_0 = arith.constant 0 : i32
    return %arg1, %arg0, %c0_i32 : i32, i32, i32
  }
  func.func @transform_1(%arg0: i32, %arg1: i32) -> (i32, i32, i32) {
    %c0_i32 = arith.constant 0 : i32
    %c0_i32_0 = arith.constant 0 : i32
    %c0_i32_1 = arith.constant 0 : i32
    return %c0_i32, %arg0, %c0_i32_0 : i32, i32, i32
  }
  func.func @transform_2(%arg0: i32, %arg1: i32) -> (i32, i32, i32) {
    %c0_i32 = arith.constant 0 : i32
    %c0_i32_0 = arith.constant 0 : i32
    %c0_i32_1 = arith.constant 0 : i32
    return %c0_i32, %arg0, %c0_i32_0 : i32, i32, i32
  }
  func.func @transform_3(%arg0: i32, %arg1: i32) -> (i32, i32, i32) {
    %c0_i32 = arith.constant 0 : i32
    %c0_i32_0 = arith.constant 0 : i32
    return %arg1, %arg0, %c0_i32 : i32, i32, i32
  }
}

</mosaic_0001>

<llo_original>
// kernel: tpu_custom_call.1
$region0: #{tpu_custom_call.1}
  #allocation0 [shape = 'u32[]', space=smem, size = 0x4, offset = 0x4, fixed_abs, tag = 'smem constant byte address 0x4 - core index']
  #allocation1 [shape = 'u32[144,128]{1,0:T(1,128)}', space=vmem, size = 0x12000, scoped, tag = 'internal scratch']
  %s0 = inlined_call_operand.hbm [shape: f32[2,2,128], index: 0, kind: input, shape index: {}]
  %s1 = inlined_call_operand.hbm [shape: f32[5,2,128], index: 1, kind: input, shape index: {}]
  %s2 = inlined_call_operand.hbm [shape: f32[5,2,128], index: 2, kind: input, shape index: {}]
  %s3 = inlined_call_operand.hbm [shape: f32[2,2,128], index: 3, kind: output, shape index: {}]
  %s4 = sld [smem:[#allocation0]]
  $region57: #{tpu_custom_call.1} parent=0
    _
  %s6 = ssub.s32 1, %s4
  %s7 = scalar_select 0, %s6, %s4
  $region1: #{tpu_custom_call.1} parent=0
    #allocation2 [shape = 'u8[2048]{0}', space=vmem, size = 0x800, scoped, tag = 'input window, operand 0']
    #allocation3 [shape = 's32[2]{0}', space=sflag, size = 0x8, scoped, tag = 'scoped memory for tpu_custom_call.1']
    #allocation4 [shape = 's32[2]{0}', space=sflag, size = 0x8, scoped, tag = 'scoped memory for tpu_custom_call.1']
    #allocation5 [shape = 'u8[5120]{0}', space=vmem, size = 0x1400, scoped, tag = 'input window, operand 1, single buffered']
    #allocation6 [shape = 's32[1]{0}', space=sflag, size = 0x4, scoped, tag = 'scoped memory for tpu_custom_call.1']
    #allocation7 [shape = 'u8[5120]{0}', space=vmem, size = 0x1400, scoped, tag = 'input window, operand 2, single buffered']
    #allocation8 [shape = 'u8[2048]{0}', space=vmem, size = 0x800, scoped, tag = 'output window, operand 0']
    %8 = vsyncpa [#allocation3], 0
    %s9 = scalar_lea.sflag [#allocation3], 1
    %10 = vsyncpa %s9, 0
    %11 = vsyncpa [#allocation6], 0
    %12 = vsyncpa [#allocation4], 0
    %s13 = scalar_lea.sflag [#allocation4], 1
    %14 = vsyncpa %s13, 0
    loop: start=0, step=1, limit=4
    $region2: #{tpu_custom_call.1} parent=1 // loop_pre_header
      _
    $region3: #{tpu_custom_call.1} parent=1 // loop_header
      %s16 = sphi 0, %s20
      %p17 = scmp.ge.s32.totalorder %s16, 4
      %s23 = sphi 0, %s35
      %s24 = sphi 0, %s31
      %s25 = sphi 0, %s23
      %s26 = sphi 0, %s24
      %s27 = sphi 0, %s25
      %s28 = sphi 0, %s26
      %s40 = sphi 0, %s42
      %s43 = sphi 0, %s40
      %s44 = sphi 0, %s43
      %s60 = sphi 0, %s44
      %s66 = sphi 0, %s68
      %s69 = sphi 0, %s66
      %s70 = sphi 0, %s69
      %s86 = sphi 0, %s70
      %s92 = sphi 0, %s94
      %s95 = sphi 0, %s92
      %s96 = sphi 0, %s95
      %s112 = sphi 0, %s96
      %s120 = sphi 0, %s122
      %s123 = sphi 0, %s120
      %s124 = sphi 0, %s123
      %s140 = sphi 0, %s124
    $region4: #{tpu_custom_call.1} parent=1 // loop_header_branch
      %19 = sbr.rel (%p17) target = $region8
    $region5: #{tpu_custom_call.1} parent=1 // loop_body
      %s21 = ssub.s32 %s16, 1
      %s22 = ssub.s32 %s16, 2
      %s29 = sadd.s32 1, %s24
      %p30 = scmp.ge.s32.totalorder %s29, 2
      %s31 = scalar_select %p30, 0, %s29
      %s32 = sadd.s32 1, %s23
      %s33 = scalar_select %p30, %s32, %s23
      %p34 = scmp.ge.s32.totalorder %s33, 1
      %s35 = scalar_select %p34, 0, %s33
      %s36 = ssub.s32 %s24, %s31
      %s37 = ssub.s32 %s23, %s35
      %s38 = sor.u32 %s36, %s37
      %p39 = scmp.eq.s32.totalorder %s38, 0
      %s41 = sadd.s32 %s40, 1
      %s42 = scalar_select %p39, %s40, %s41
      %p45 = pneg %p39
      %p46 = scmp.eq.s32.totalorder %s16, 1
      %p47 = por %p45, %p46
      %p48 = scmp.ne.s32.totalorder %s40, %s43
      %p49 = scmp.eq.s32.totalorder %s16, 0
      %p50 = por %p48, %p49
      %p51 = scmp.ne.s32.totalorder %s40, %s43
      %p52 = scmp.eq.s32.totalorder %s21, 1
      %p53 = por %p51, %p52
      %p54 = scmp.ne.s32.totalorder %s43, %s44
      %p55 = scmp.eq.s32.totalorder %s21, 0
      %p56 = por %p54, %p55
      %p57 = scmp.ne.s32.totalorder %s43, %s44
      %p58 = scmp.eq.s32.totalorder %s22, 1
      %p59 = por %p57, %p58
      %p61 = scmp.ne.s32.totalorder %s44, %s60
      %p62 = scmp.eq.s32.totalorder %s22, 0
      %p63 = por %p61, %p62
      %s64 = ssub.s32 %s23, %s35
      %p65 = scmp.eq.s32.totalorder %s64, 0
      %s67 = sadd.s32 %s66, 1
      %s68 = scalar_select %p65, %s66, %s67
      %p71 = pneg %p65
      %p72 = scmp.eq.s32.totalorder %s16, 1
      %p73 = por %p71, %p72
      %p74 = scmp.ne.s32.totalorder %s66, %s69
      %p75 = scmp.eq.s32.totalorder %s16, 0
      %p76 = por %p74, %p75
      %p77 = scmp.ne.s32.totalorder %s66, %s69
      %p78 = scmp.eq.s32.totalorder %s21, 1
      %p79 = por %p77, %p78
      %p80 = scmp.ne.s32.totalorder %s69, %s70
      %p81 = scmp.eq.s32.totalorder %s21, 0
      %p82 = por %p80, %p81
      %p83 = scmp.ne.s32.totalorder %s69, %s70
      %p84 = scmp.eq.s32.totalorder %s22, 1
      %p85 = por %p83, %p84
      %p87 = scmp.ne.s32.totalorder %s70, %s86
      %p88 = scmp.eq.s32.totalorder %s22, 0
      %p89 = por %p87, %p88
      %s90 = ssub.s32 %s23, %s35
      %p91 = scmp.eq.s32.totalorder %s90, 0
      %s93 = sadd.s32 %s92, 1
      %s94 = scalar_select %p91, %s92, %s93
      %p97 = pneg %p91
      %p98 = scmp.eq.s32.totalorder %s16, 1
      %p99 = por %p97, %p98
      %p100 = scmp.ne.s32.totalorder %s92, %s95
      %p101 = scmp.eq.s32.totalorder %s16, 0
      %p102 = por %p100, %p101
      %p103 = scmp.ne.s32.totalorder %s92, %s95
      %p104 = scmp.eq.s32.totalorder %s21, 1
      %p105 = por %p103, %p104
      %p106 = scmp.ne.s32.totalorder %s95, %s96
      %p107 = scmp.eq.s32.totalorder %s21, 0
      %p108 = por %p106, %p107
      %p109 = scmp.ne.s32.totalorder %s95, %s96
      %p110 = scmp.eq.s32.totalorder %s22, 1
      %p111 = por %p109, %p110
      %p113 = scmp.ne.s32.totalorder %s96, %s112
      %p114 = scmp.eq.s32.totalorder %s22, 0
      %p115 = por %p113, %p114
      %s116 = ssub.s32 %s24, %s31
      %s117 = ssub.s32 %s23, %s35
      %s118 = sor.u32 %s116, %s117
      %p119 = scmp.eq.s32.totalorder %s118, 0
      %s121 = sadd.s32 %s120, 1
      %s122 = scalar_select %p119, %s120, %s121
      %p125 = pneg %p119
      %p126 = scmp.eq.s32.totalorder %s16, 1
      %p127 = por %p125, %p126
      %p128 = scmp.ne.s32.totalorder %s120, %s123
      %p129 = scmp.eq.s32.totalorder %s16, 0
      %p130 = por %p128, %p129
      %p131 = scmp.ne.s32.totalorder %s120, %s123
      %p132 = scmp.eq.s32.totalorder %s21, 1
      %p133 = por %p131, %p132
      %p134 = scmp.ne.s32.totalorder %s123, %s124
      %p135 = scmp.eq.s32.totalorder %s21, 0
      %p136 = por %p134, %p135
      %p137 = scmp.ne.s32.totalorder %s123, %s124
      %p138 = scmp.eq.s32.totalorder %s22, 1
      %p139 = por %p137, %p138
      %p141 = scmp.ne.s32.totalorder %s124, %s140
      %p142 = scmp.eq.s32.totalorder %s22, 0
      %p143 = por %p141, %p142
      %p144 = scmp.le.s32.totalorder 1, %s16
      %p145 = scmp.lt.s32.totalorder %s16, 3
      %p146 = pnand %p144, %p145
      %p147 = pneg %p146
      // Predicated region
      $region9: #{tpu_custom_call.1} parent=5 // pred_check
        _
      $region10: #{tpu_custom_call.1} parent=5 // pred_check_branch
        %149 = sbr.rel (%p146) target = $region12
      $region11: #{tpu_custom_call.1} parent=5 // pred_region
        %s150 = ssub.s32 %s16, 1
        // Predicated region
        $region13: #{tpu_custom_call.1} parent=11 // pred_check
          %p151 = pneg %p82
        $region14: #{tpu_custom_call.1} parent=11 // pred_check_branch
          %153 = sbr.rel (%p151) target = $region16
        $region15: #{tpu_custom_call.1} parent=11 // pred_region
          %s155 = ssub.s32 160, 160
          %156 = vsyncadd [#allocation6], %s155
          %s157 = smul.addr %s25, 32
          %s158 = scalar_lea.hbm %s1, %s157
          %s159 = sshll.u32 [#allocation5], 4
          %s160 = int_to_ptr.vmem [resolvable:$true] %s159
          %165 = dma.hbm_to_vmem [thread:$0]  %s158, 160, %s160, [#allocation6], 32, 32, 2
        $region16: #{tpu_custom_call.1} parent=11 // pred_fallthru
          _
        // Predicated region
        $region17: #{tpu_custom_call.1} parent=11 // pred_check
          %p166 = pneg %p108
        $region18: #{tpu_custom_call.1} parent=11 // pred_check_branch
          %168 = sbr.rel (%p166) target = $region20
        $region19: #{tpu_custom_call.1} parent=11 // pred_region
          %s170 = ssub.s32 160, 160
          %171 = vsyncadd [#allocation6], %s170
          %s172 = smul.addr %s25, 32
          %s173 = scalar_lea.hbm %s2, %s172
          %s174 = sshll.u32 [#allocation7], 4
          %s175 = int_to_ptr.vmem [resolvable:$true] %s174
          %180 = dma.hbm_to_vmem [thread:$0]  %s173, 160, %s175, [#allocation6], 32, 32, 2
        $region20: #{tpu_custom_call.1} parent=11 // pred_fallthru
          _
      $region12: #{tpu_custom_call.1} parent=5 // pred_fallthru
        _
      %p181 = scmp.lt.s32.totalorder %s16, 2
      // Predicated region
      $region21: #{tpu_custom_call.1} parent=5 // pred_check
        %p182 = pneg %p181
      $region22: #{tpu_custom_call.1} parent=5 // pred_check_branch
        %184 = sbr.rel (%p182) target = $region24
      $region23: #{tpu_custom_call.1} parent=5 // pred_region
        // Predicated region
        $region25: #{tpu_custom_call.1} parent=23 // pred_check
          %p185 = pneg %p50
        $region26: #{tpu_custom_call.1} parent=23 // pred_check_branch
          %187 = sbr.rel (%p185) target = $region28
        $region27: #{tpu_custom_call.1} parent=23 // pred_region
          %s188 = sand.u32 %s40, 1
          %s189 = scalar_lea.sflag [#allocation3], %s188
          %s190 = sand.u32 %s40, 1
          %s191 = smul.addr %s190, 2
          %s192 = scalar_lea.vmem [#allocation2], %s191
          %s194 = ssub.s32 32, 32
          %195 = vsyncadd %s189, %s194
          %s196 = sadd.s32 %s23, %s24
          %s197 = smul.addr %s196, 32
          %s198 = scalar_lea.hbm %s0, %s197
          %s200 = sshll.u32 %s192, 4
          %s201 = int_to_ptr.vmem [resolvable:$true] %s200
          %203 = dma.hbm_to_vmem [thread:$0]  %s198, 32, %s201, %s189
        $region28: #{tpu_custom_call.1} parent=23 // pred_fallthru
          _
      $region24: #{tpu_custom_call.1} parent=5 // pred_fallthru
        _
      %p204 = scmp.le.s32.totalorder 1, %s16
      %p205 = scmp.lt.s32.totalorder %s16, 3
      %p206 = pnand %p204, %p205
      %p207 = pneg %p206
      // Predicated region
      $region29: #{tpu_custom_call.1} parent=5 // pred_check
        _
      $region30: #{tpu_custom_call.1} parent=5 // pred_check_branch
        %209 = sbr.rel (%p206) target = $region32
      $region31: #{tpu_custom_call.1} parent=5 // pred_region
        %s210 = ssub.s32 %s16, 1
        %s211 = sand.u32 %s43, 1
        %s212 = scalar_lea.sflag [#allocation3], %s211
        %s213 = sand.u32 %s43, 1
        %s214 = smul.addr %s213, 2
        %s215 = scalar_lea.vmem [#allocation2], %s214
        // Predicated region
        $region33: #{tpu_custom_call.1} parent=31 // pred_check
          %p216 = pneg %p56
        $region34: #{tpu_custom_call.1} parent=31 // pred_check_branch
          %218 = sbr.rel (%p216) target = $region36
        $region35: #{tpu_custom_call.1} parent=31 // pred_region
          %219 = dma.done %s212, 32
        $region36: #{tpu_custom_call.1} parent=31 // pred_fallthru
          _
        // Predicated region
        $region37: #{tpu_custom_call.1} parent=31 // pred_check
          %p220 = pneg %p82
        $region38: #{tpu_custom_call.1} parent=31 // pred_check_branch
          %222 = sbr.rel (%p220) target = $region40
        $region39: #{tpu_custom_call.1} parent=31 // pred_region
          %223 = dma.done [#allocation6], 160
        $region40: #{tpu_custom_call.1} parent=31 // pred_fallthru
          _
        // Predicated region
        $region41: #{tpu_custom_call.1} parent=31 // pred_check
          %p224 = pneg %p108
        $region42: #{tpu_custom_call.1} parent=31 // pred_check_branch
          %226 = sbr.rel (%p224) target = $region44
        $region43: #{tpu_custom_call.1} parent=31 // pred_region
          %227 = dma.done [#allocation6], 160
        $region44: #{tpu_custom_call.1} parent=31 // pred_fallthru
          _
        %s228 = sand.u32 %s43, 1
        %s229 = scalar_lea.sflag [#allocation3], %s228
        %s230 = sand.u32 %s43, 1
        %s231 = smul.addr %s230, 2
        %s232 = scalar_lea.vmem [#allocation2], %s231
        %p233 = pneg %p56
        %p234 = pneg %p53
        %p235 = pneg %p82
        %p236 = pneg %p79
        %p237 = pneg %p108
        %p238 = pneg %p105
        %p239 = pneg %p136
        %p240 = pneg %p133
        %s241 = sand.u32 %s123, 1
        %s242 = scalar_lea.sflag [#allocation4], %s241
        %s243 = sand.u32 %s123, 1
        %s244 = smul.addr %s243, 2
        %s245 = scalar_lea.vmem [#allocation8], %s244
        %v246 = vld [vmem:[%s215] sm:$0x3]
        %v247 = vmul.f32 %v246, %v246
        %v248 = vsub.f32 0.1, %v247
        %v249 = vmul.f32 %v246, %v248
        %v250 = vld [vmem:[#allocation5] sm:$0x3]
        %v251 = vld [vmem:[#allocation7] sm:$0x3]
        %v252 = vmul.f32 %v250, %v246
        %v253 = vmul.f32 %v251, %v249
        %v254 = vadd.f32 %v252, %v253
        %v255 = vmul.f32 %v254, %v254
        %v256 = vsub.f32 0.1, %v255
        %v257 = vmul.f32 %v254, %v256
        %v258 = vmul.f32 %v249, -0.4178905
        %v259 = vadd.f32 %v257, %v258
        %s260 = scalar_lea.vmem [#allocation5], 2
        %v261 = vld [vmem:[%s260] sm:$0x3]
        %s262 = scalar_lea.vmem [#allocation7], 2
        %v263 = vld [vmem:[%s262] sm:$0x3]
        %v264 = vmul.f32 %v261, %v254
        %v265 = vmul.f32 %v263, %v259
        %v266 = vadd.f32 %v264, %v265
        %v267 = vmul.f32 %v266, %v266
        %v268 = vsub.f32 0.1, %v267
        %v269 = vmul.f32 %v266, %v268
        %v270 = vmul.f32 %v259, -1.1921517
        %v271 = vadd.f32 %v269, %v270
        %s272 = scalar_lea.vmem [#allocation5], 4
        %v273 = vld [vmem:[%s272] sm:$0x3]
        %s274 = scalar_lea.vmem [#allocation7], 4
        %v275 = vld [vmem:[%s274] sm:$0x3]
        %v276 = vmul.f32 %v273, %v266
        %v277 = vmul.f32 %v275, %v271
        %v278 = vadd.f32 %v276, %v277
        %v279 = vmul.f32 %v278, %v278
        %v280 = vsub.f32 0.1, %v279
        %v281 = vmul.f32 %v278, %v280
        %v282 = vmul.f32 %v271, -1.6977847
        %v283 = vadd.f32 %v281, %v282
        %s284 = scalar_lea.vmem [#allocation5], 6
        %v285 = vld [vmem:[%s284] sm:$0x3]
        %s286 = scalar_lea.vmem [#allocation7], 6
        %v287 = vld [vmem:[%s286] sm:$0x3]
        %v288 = vmul.f32 %v285, %v278
        %v289 = vmul.f32 %v287, %v283
        %v290 = vadd.f32 %v288, %v289
        %v291 = vmul.f32 %v290, %v290
        %v292 = vsub.f32 0.1, %v291
        %v293 = vmul.f32 %v290, %v292
        %v294 = vmul.f32 %v283, -1.5141834
        %v295 = vadd.f32 %v293, %v294
        %s296 = scalar_lea.vmem [#allocation5], 8
        %v297 = vld [vmem:[%s296] sm:$0x3]
        %s298 = scalar_lea.vmem [#allocation7], 8
        %v299 = vld [vmem:[%s298] sm:$0x3]
        %v300 = vmul.f32 %v297, %v290
        %v301 = vmul.f32 %v299, %v295
        %v302 = vadd.f32 %v300, %v301
        %303 = vst [vmem:[%s245] sm:$0x3] %v302
        %s304 = sand.u32 %s123, 1
        %s305 = scalar_lea.sflag [#allocation4], %s304
        %s306 = sand.u32 %s123, 1
        %s307 = smul.addr %s306, 2
        %s308 = scalar_lea.vmem [#allocation8], %s307
        // Predicated region
        $region45: #{tpu_custom_call.1} parent=31 // pred_check
          %p309 = pneg %p133
        $region46: #{tpu_custom_call.1} parent=31 // pred_check_branch
          %311 = sbr.rel (%p309) target = $region48
        $region47: #{tpu_custom_call.1} parent=31 // pred_region
          %s313 = ssub.s32 32, 32
          %314 = vsyncadd %s305, %s313
          %s315 = sadd.s32 %s25, %s26
          %s316 = smul.addr %s315, 32
          %s317 = scalar_lea.hbm %s3, %s316
          %s319 = sshll.u32 %s308, 4
          %s320 = int_to_ptr.vmem [resolvable:$true] %s319
          %322 = dma.vmem_to_hbm [thread:$0]  %s320, 32, %s317, %s305
        $region48: #{tpu_custom_call.1} parent=31 // pred_fallthru
          _
      $region32: #{tpu_custom_call.1} parent=5 // pred_fallthru
        _
      %p323 = scmp.le.s32.totalorder 2, %s16
      // Predicated region
      $region49: #{tpu_custom_call.1} parent=5 // pred_check
        %p324 = pneg %p323
      $region50: #{tpu_custom_call.1} parent=5 // pred_check_branch
        %326 = sbr.rel (%p324) target = $region52
      $region51: #{tpu_custom_call.1} parent=5 // pred_region
        %s327 = ssub.s32 %s16, 2
        // Predicated region
        $region53: #{tpu_custom_call.1} parent=51 // pred_check
          %p328 = pneg %p139
        $region54: #{tpu_custom_call.1} parent=51 // pred_check_branch
          %330 = sbr.rel (%p328) target = $region56
        $region55: #{tpu_custom_call.1} parent=51 // pred_region
          %s331 = sand.u32 %s124, 1
          %s332 = scalar_lea.sflag [#allocation4], %s331
          %s333 = sand.u32 %s124, 1
          %s334 = smul.addr %s333, 2
          %s335 = scalar_lea.vmem [#allocation8], %s334
          %336 = dma.done %s332, 32
        $region56: #{tpu_custom_call.1} parent=51 // pred_fallthru
          _
      $region52: #{tpu_custom_call.1} parent=5 // pred_fallthru
        _
    $region6: #{tpu_custom_call.1} parent=1 // loop_footer
      %s20 = sadd.s32 1, %s16
    $region7: #{tpu_custom_call.1} parent=1 // loop_footer_branch
      %15 = sbr.rel target = $region3
    $region8: #{tpu_custom_call.1} parent=1 // loop_exit
      _
    %337 = vsyncpa [#allocation3], 1
    %s338 = scalar_lea.sflag [#allocation3], 1
    %339 = vsyncpa %s338, 1
    %340 = vsyncpa [#allocation6], 1
    %341 = vsyncpa [#allocation4], 1
    %s342 = scalar_lea.sflag [#allocation4], 1
    %343 = vsyncpa %s342, 1

</llo_original>
